<compile_context>
chip_gen: v7x
topology: tpu7x:2x2x1
jax: 0.10.0
libtpu: 0.0.40
codegen_flags: <defaults>
</compile_context>

<pallas_src>
import functools

import jax
import jax.numpy as jnp
from jax.experimental import pallas as pl
from jax.experimental.pallas import tpu as pltpu


def _round_up(x, m):
    return ((x + m - 1) // m) * m


def _tpu_vmem_bytes():
    """Physical VMEM per core; used only for tile-size policy (safe fallback)."""
    try:
        info = pltpu.get_tpu_info()
        v = getattr(info, "vmem_capacity_bytes", None)
        if v:
            return int(v)
    except Exception:
        pass
    return 64 * 1024 * 1024  # conservative (v7x-sized) default


# ---------------------------------------------------------------------------
# Kernels: single K block resident per grid step
# ---------------------------------------------------------------------------
def _identity_kernel(x_ref, w1_ref, b1_ref, o_ref, *, tn, hid_axis, n_h):
    """out tile = relu(x @ W1_tile + b1_tile) + x[:, tile].

    The skip tile is sliced out of the resident (tm, K) matmul block (valid
    because K-pad >= H-pad in the identity branch), so x is DMA'd only once.
    """
    h = jnp.dot(x_ref[...], w1_ref[...], preferred_element_type=jnp.float32)
    h = h + b1_ref[...]
    if n_h == 1:
        skip = x_ref[:, :tn]
    else:
        j = pl.program_id(hid_axis)
        skip = x_ref[:, pl.ds(pl.multiple_of(j * tn, 128), tn)]
    o_ref[...] = (jnp.maximum(h, 0.0) + skip.astype(jnp.float32)).astype(o_ref.dtype)


def _proj_kernel(x_ref, wc_ref, b1_ref, o_ref, *, tn):
    """Projection skip, fused: one MXU dot against [W1_tile | W2_tile]."""
    y = jnp.dot(x_ref[...], wc_ref[...], preferred_element_type=jnp.float32)
    h = y[:, :tn] + b1_ref[...]
    o_ref[...] = (jnp.maximum(h, 0.0) + y[:, tn:]).astype(o_ref.dtype)


# ---------------------------------------------------------------------------
# K-tiled kernels: K-reduction axis is the LAST grid axis ("arbitrary"),
# accumulation in an f32 VMEM scratch, epilogue on the last K step.
# ---------------------------------------------------------------------------
def _identity_kernel_ktiled(x_ref, xs_ref, w1_ref, b1_ref, o_ref, acc_ref):
    k = pl.program_id(2)

    @pl.when(k == 0)
    def _():
        acc_ref[...] = jnp.zeros_like(acc_ref)

    acc_ref[...] += jnp.dot(x_ref[...], w1_ref[...],
                            preferred_element_type=jnp.float32)

    @pl.when(k == pl.num_programs(2) - 1)
    def _():
        h = acc_ref[...] + b1_ref[...]
        o_ref[...] = (jnp.maximum(h, 0.0)
                      + xs_ref[...].astype(jnp.float32)).astype(o_ref.dtype)


def _proj_kernel_ktiled(x_ref, wc_ref, b1_ref, o_ref, acc_ref, *, tn):
    k = pl.program_id(2)

    @pl.when(k == 0)
    def _():
        acc_ref[...] = jnp.zeros_like(acc_ref)

    acc_ref[...] += jnp.dot(x_ref[...], wc_ref[...],
                            preferred_element_type=jnp.float32)

    @pl.when(k == pl.num_programs(2) - 1)
    def _():
        y = acc_ref[...]
        h = y[:, :tn] + b1_ref[...]
        o_ref[...] = (jnp.maximum(h, 0.0) + y[:, tn:]).astype(o_ref.dtype)


# ---------------------------------------------------------------------------
# One-time parameter preparation (outside the forward pass)
# ---------------------------------------------------------------------------
def prepare_res_block_params(w1, b1, w2, *, compute_dtype=jnp.bfloat16,
                             k_tile=None):
    """Transpose / pad / pack the Res_Block weights once.

    w1: [hidden, input] with bias b1: [hidden]; w2: [hidden, input] (no bias).
    compute_dtype: dtype of the MXU operands (accumulation is always f32).
                   Default bf16 halves weight/activation HBM+VMEM bytes; pass
                   jnp.float32 (or None = keep input dtype) for bit-exact f32.
    k_tile:        per-step K width; None = auto (full K, or 512 when K > 2048).
    """
    hidden_unit, input_unit = w1.shape
    assert b1.shape == (hidden_unit,)
    identity = (input_unit == hidden_unit)
    wdtype = jnp.dtype(w1.dtype if compute_dtype is None else compute_dtype)

    # Lane-dense output tile width chosen to minimize hidden padding.
    h_pad = _round_up(hidden_unit, 128)
    tn = 256 if (h_pad >= 256 and h_pad % 256 == 0) else 128

    # Identity branch slices the skip tile out of padded x -> K-pad >= H-pad.
    k_pad = h_pad if identity else _round_up(input_unit, 128)
    if k_tile is None:
        tk = 512 if k_pad > 2048 else k_pad
    else:
        tk = min(_round_up(k_tile, 128), k_pad)
    k_pad = _round_up(k_pad, tk)

    def _pad2(a, rows, cols):
        return jnp.pad(a, ((0, rows - a.shape[0]), (0, cols - a.shape[1])))

    w1t = _pad2(jnp.transpose(w1).astype(wdtype), k_pad, h_pad)        # [Kp, Hp]
    b1_row = jnp.pad(b1.astype(jnp.float32),
                     (0, h_pad - hidden_unit)).reshape(1, h_pad)

    params = dict(identity=identity, input_unit=input_unit,
                  hidden_unit=hidden_unit, k_pad=k_pad, h_pad=h_pad,
                  tn=tn, tk=tk, b1=b1_row, compute_dtype=wdtype)
    if identity:
        params["w1t"] = w1t
    else:
        w2t = _pad2(jnp.transpose(w2).astype(wdtype), k_pad, h_pad)    # [Kp, Hp]
        n_tiles = h_pad // tn
        # Interleave per output tile: column block j of [Kp, 2*Hp] is
        # [ W1^T cols of tile j | W2^T cols of tile j ] -> one fused MXU dot.
        wc = jnp.concatenate(
            [w1t.reshape(k_pad, n_tiles, tn), w2t.reshape(k_pad, n_tiles, tn)],
            axis=2).reshape(k_pad, 2 * h_pad)
        params["wc"] = wc
    return params


def _pick_tm(batch, tm_max):
    """Largest batch tile (multiple of 8) whose tail padding stays small."""
    b8 = _round_up(batch, 8)
    tol = max(b8 // 8, 7)           # allow <= ~12.5% (and always one sublane grp)
    for cand in (512, 256, 128, 64, 32, 16, 8):
        if cand > tm_max:
            continue
        if _round_up(b8, cand) - b8 <= tol:
            return cand
    return 8


# ---------------------------------------------------------------------------
# Forward
# ---------------------------------------------------------------------------
def res_block_forward(x, params):
    """x: [batch, input_unit] -> [batch, hidden_unit]."""
    batch, input_unit = x.shape
    assert input_unit == params["input_unit"], (input_unit, params["input_unit"])
    hidden_unit = params["hidden_unit"]
    identity = params["identity"]
    k_pad, h_pad = params["k_pad"], params["h_pad"]
    tn, tk = params["tn"], params["tk"]
    cdt = params["compute_dtype"]
    out_dtype = x.dtype

    n_k = k_pad // tk
    n_h = h_pad // tn
    wn = tn if identity else 2 * tn          # weight-block / accumulator width
    cdt_size = jnp.dtype(cdt).itemsize
    out_size = jnp.dtype(out_dtype).itemsize

    # ---- batch tiling -------------------------------------------------------
    vmem_phys = _tpu_vmem_bytes()
    tm_max = 512 if (vmem_phys >= (100 << 20) and tk <= 2048) else 256
    tm = _pick_tm(batch, tm_max)

    def footprint(tm_):
        f = 2 * tm_ * tk * cdt_size          # x stream (double-buffered)
        f += 2 * tk * wn * cdt_size          # weight stream
        f += 2 * tn * 4                      # bias stream
        f += 2 * tm_ * tn * out_size         # output stream
        if n_k > 1:
            f += tm_ * wn * 4                # f32 accumulator scratch
            if identity:
                f += 2 * tm_ * tn * cdt_size  # skip stream (K-tiled path only)
        return f

    while tm > 8 and footprint(tm) > vmem_phys // 2:
        tm //= 2

    b8 = _round_up(batch, 8)
    b_pad = _round_up(b8, tm)
    n_b = b_pad // tm
    # Keep both TensorCores busy (v7x) when the whole problem is one grid step.
    if n_h == 1 and n_b == 1 and b8 >= 16:
        tm = max(8, tm // 2)
        b_pad = _round_up(b8, tm)
        n_b = b_pad // tm

    # ---- pad / cast activations once -----------------------------------------
    xp = x.astype(cdt)
    if (b_pad, k_pad) != (batch, input_unit):
        xp = jnp.pad(xp, ((0, b_pad - batch), (0, k_pad - input_unit)))

    # ---- grid order: re-stream the smaller operand ----------------------------
    x_bytes = b_pad * k_pad * cdt_size
    w_bytes = k_pad * h_pad * cdt_size * (1 if identity else 2)
    hid_outer = (w_bytes + n_h * x_bytes) <= (x_bytes + n_b * w_bytes)

    if n_k == 1:
        if hid_outer:
            grid = (n_h, n_b)
            hid_axis = 0
            x_map = lambda h, b: (b, 0)
            w_map = lambda h, b: (0, h)
            v_map = lambda h, b: (0, h)
            o_map = lambda h, b: (b, h)
        else:
            grid = (n_b, n_h)
            hid_axis = 1
            x_map = lambda b, h: (b, 0)
            w_map = lambda b, h: (0, h)
            v_map = lambda b, h: (0, h)
            o_map = lambda b, h: (b, h)
        sem = ("parallel", "parallel")
        x_block = (tm, k_pad)
    else:
        if hid_outer:
            grid = (n_h, n_b, n_k)
            x_map = lambda h, b, k: (b, k)
            w_map = lambda h, b, k: (k, h)
            v_map = lambda h, b, k: (0, h)
            o_map = lambda h, b, k: (b, h)
        else:
            grid = (n_b, n_h, n_k)
            x_map = lambda b, h, k: (b, k)
            w_map = lambda b, h, k: (k, h)
            v_map = lambda b, h, k: (0, h)
            o_map = lambda b, h, k: (b, h)
        hid_axis = 0 if hid_outer else 1
        sem = ("parallel", "parallel", "arbitrary")
        x_block = (tm, tk)

    x_spec = pl.BlockSpec(x_block, x_map)
    b1_spec = pl.BlockSpec((1, tn), v_map)
    out_spec = pl.BlockSpec((tm, tn), o_map)
    out_shape = jax.ShapeDtypeStruct((b_pad, h_pad), out_dtype)

    scratch = []
    if n_k == 1:
        if identity:
            kernel = functools.partial(_identity_kernel, tn=tn,
                                       hid_axis=hid_axis, n_h=n_h)
            in_specs = [x_spec, pl.BlockSpec((k_pad, tn), w_map), b1_spec]
            args = (xp, params["w1t"], params["b1"])
        else:
            kernel = functools.partial(_proj_kernel, tn=tn)
            in_specs = [x_spec, pl.BlockSpec((k_pad, 2 * tn), w_map), b1_spec]
            args = (xp, params["wc"], params["b1"])
    else:
        if identity:
            # Skip tile is not guaranteed resident at the K epilogue step, so it
            # keeps its own (small) input stream on the K-tiled path only.
            kernel = _identity_kernel_ktiled
            in_specs = [x_spec, pl.BlockSpec((tm, tn), o_map),
                        pl.BlockSpec((tk, tn), w_map), b1_spec]
            args = (xp, xp, params["w1t"], params["b1"])
            scratch = [pltpu.VMEM((tm, tn), jnp.float32)]
        else:
            kernel = functools.partial(_proj_kernel_ktiled, tn=tn)
            in_specs = [x_spec, pl.BlockSpec((tk, 2 * tn), w_map), b1_spec]
            args = (xp, params["wc"], params["b1"])
            scratch = [pltpu.VMEM((tm, 2 * tn), jnp.float32)]

    # VMEM limit from the actual block footprints (+ headroom), capped below
    # physical VMEM of the current generation.
    vmem_cap = max(32 << 20, min(96 << 20, (vmem_phys * 3) // 4))
    vmem_limit = int(min(max(footprint(tm) * 3 // 2 + (4 << 20), 32 << 20),
                         vmem_cap))

    out = pl.pallas_call(
        kernel,
        out_shape=out_shape,
        grid_spec=pltpu.PrefetchScalarGridSpec(
            num_scalar_prefetch=0,
            grid=grid,
            in_specs=in_specs,
            out_specs=out_spec,
            scratch_shapes=scratch,
        ),
        compiler_params=pltpu.CompilerParams(
            dimension_semantics=sem,
            vmem_limit_bytes=vmem_limit),
    )(*args)

    if (b_pad, h_pad) != (batch, hidden_unit):
        out = out[:batch, :hidden_unit]
    return out


# ---------------------------------------------------------------------------
# Reference + tests
# ---------------------------------------------------------------------------
def _torch_like_linear_init(key, out_features, in_features, with_bias):
    """Mimics nn.Linear default init (uniform +/- 1/sqrt(fan_in))."""
    bound = 1.0 / jnp.sqrt(jnp.float32(in_features))
    kw, kb = jax.random.split(key)
    w = jax.random.uniform(kw, (out_features, in_features), jnp.float32,
                           minval=-bound, maxval=bound)
    b = (jax.random.uniform(kb, (out_features,), jnp.float32,
                            minval=-bound, maxval=bound)
         if with_bias else None)
    return w, b


def _reference(x, w1, b1, w2, input_unit, hidden_unit):
    h = jnp.maximum(x @ w1.T + b1, 0.0)
    if input_unit == hidden_unit:
        return h + x
    return h + x @ w2.T


def _run_case(key, batch, input_unit, hidden_unit, *, compute_dtype,
              atol, rtol, k_tile=None):
    k_x, k_l1, k_l2 = jax.random.split(key, 3)
    x = jax.random.normal(k_x, (batch, input_unit), jnp.float32)
    w1, b1 = _torch_like_linear_init(k_l1, hidden_unit, input_unit, True)
    w2, _ = _torch_like_linear_init(k_l2, hidden_unit, input_unit, False)

    params = prepare_res_block_params(w1, b1, w2, compute_dtype=compute_dtype,
                                      k_tile=k_tile)
    out = res_block_forward(x, params)
    jax.block_until_ready(out)
    ref = _reference(x, w1, b1, w2, input_unit, hidden_unit)
    assert out.shape == ref.shape, (out.shape, ref.shape)
    err = jnp.max(jnp.abs(out - ref))
    assert jnp.allclose(out, ref, atol=atol, rtol=rtol), (
        f"mismatch B={batch} in={input_unit} hid={hidden_unit} "
        f"dtype={compute_dtype} k_tile={k_tile}: max err {err}")


if __name__ == "__main__":
    keys = jax.random.split(jax.random.PRNGKey(0), 9)
    f32 = jnp.float32

    # 1. toy, identity skip (input == hidden), single tile
    _run_case(keys[0], 8, 32, 32, compute_dtype=f32, atol=1e-5, rtol=1e-5)
    # 2. toy, projection skip
    _run_case(keys[1], 8, 32, 64, compute_dtype=f32, atol=1e-5, rtol=1e-5)
    # 3. multi-hidden-tile projection
    _run_case(keys[2], 512, 32, 512, compute_dtype=f32, atol=1e-4, rtol=1e-4)
    # 4. multi-batch-tile identity (exercises megacore split of the batch axis)
    _run_case(keys[3], 512, 256, 256, compute_dtype=f32, atol=1e-4, rtol=1e-4)
    # 5. identity with >1 hidden tiles (exercises in-kernel dynamic skip slice)
    _run_case(keys[4], 64, 512, 512, compute_dtype=f32, atol=1e-4, rtol=1e-4)
    # 6. K-tiled projection (forced small k_tile to exercise the accumulator path)
    _run_case(keys[5], 64, 640, 384, compute_dtype=f32, atol=2e-4, rtol=1e-4,
              k_tile=128)
    # 7. K-tiled identity
    _run_case(keys[6], 64, 384, 384, compute_dtype=f32, atol=2e-4, rtol=1e-4,
              k_tile=128)
    # 8. default bf16 MXU operands, projection (tolerance-checked)
    _run_case(keys[7], 128, 128, 256, compute_dtype=jnp.bfloat16,
              atol=6e-2, rtol=3e-2)
    # 9. default bf16 MXU operands, identity (skip path also bf16-cast)
    _run_case(keys[8], 128, 128, 128, compute_dtype=jnp.bfloat16,
              atol=6e-2, rtol=3e-2)

    print("KERNEL_OK")
</pallas_src>

<mosaic_0001>
module attributes {stable_mosaic.version = 11 : i64} {
  func.func @_identity_kernel(%arg0: i32, %arg1: i32, %arg2: memref<8x128xf32, #tpu.memory_space<vmem>>, %arg3: memref<128x128xf32, #tpu.memory_space<vmem>>, %arg4: memref<1x128xf32, #tpu.memory_space<vmem>>, %arg5: memref<8x128xf32, #tpu.memory_space<vmem>>) attributes {dimension_semantics = [#tpu.dimension_semantics<parallel>, #tpu.dimension_semantics<parallel>], iteration_bounds = array<i64: 1, 1>, scalar_prefetch = 0 : i64, scratch_operands = 0 : i64, tpu.core_type = #tpu.core_type<tc>, window_params = [{transform_indices = @transform_0, window_bounds = array<i64: 8, 128>}, {transform_indices = @transform_1, window_bounds = array<i64: 128, 128>}, {transform_indices = @transform_2, window_bounds = array<i64: 1, 128>}, {transform_indices = @transform_3, window_bounds = array<i64: 8, 128>}]} {
    %c0 = arith.constant 0 : index
    %c0_0 = arith.constant 0 : index
    %0 = vector.load %arg2[%c0, %c0_0] : memref<8x128xf32, #tpu.memory_space<vmem>>, vector<8x128xf32>
    %c0_1 = arith.constant 0 : index
    %c0_2 = arith.constant 0 : index
    %1 = vector.load %arg3[%c0_1, %c0_2] : memref<128x128xf32, #tpu.memory_space<vmem>>, vector<128x128xf32>
    %cst = arith.constant dense<0.000000e+00> : vector<8x128xf32>
    %2 = tpu.matmul %0, %1, %cst {dimension_numbers = #tpu.dot_dimension_numbers<[1], [0], [0], [1], [0, 0, 1, 1], [], []>} : vector<8x128xf32>, vector<128x128xf32>, vector<8x128xf32> -> vector<8x128xf32>
    %c0_3 = arith.constant 0 : index
    %c0_4 = arith.constant 0 : index
    %3 = vector.load %arg4[%c0_3, %c0_4] : memref<1x128xf32, #tpu.memory_space<vmem>>, vector<1x128xf32>
    %4 = vector.broadcast %3 : vector<1x128xf32> to vector<8x128xf32>
    %5 = arith.addf %2, %4 : vector<8x128xf32>
    %c0_5 = arith.constant 0 : index
    %c0_6 = arith.constant 0 : index
    %6 = vector.load %arg2[%c0_5, %c0_6] : memref<8x128xf32, #tpu.memory_space<vmem>>, vector<8x128xf32>
    %cst_7 = arith.constant 0.000000e+00 : f32
    %7 = vector.broadcast %cst_7 : f32 to vector<8x128xf32>
    %8 = arith.maximumf %5, %7 : vector<8x128xf32>
    %9 = arith.addf %8, %6 : vector<8x128xf32>
    %c0_8 = arith.constant 0 : index
    %c0_9 = arith.constant 0 : index
    %10 = vector.load %arg5[%c0_8, %c0_9] : memref<8x128xf32, #tpu.memory_space<vmem>>, vector<8x128xf32>
    tpu.vector_store %arg5[%c0_8, %c0_9], %9 {strides = array<i32>} : memref<8x128xf32, #tpu.memory_space<vmem>>, vector<8x128xf32>,
    return
  }
  func.func @transform_0(%arg0: i32, %arg1: i32) -> (i32, i32) {
    %c0_i32 = arith.constant 0 : i32
    %c0_i32_0 = arith.constant 0 : i32
    return %arg1, %c0_i32 : i32, i32
  }
  func.func @transform_1(%arg0: i32, %arg1: i32) -> (i32, i32) {
    %c0_i32 = arith.constant 0 : i32
    %c0_i32_0 = arith.constant 0 : i32
    return %c0_i32, %arg0 : i32, i32
  }
  func.func @transform_2(%arg0: i32, %arg1: i32) -> (i32, i32) {
    %c0_i32 = arith.constant 0 : i32
    %c0_i32_0 = arith.constant 0 : i32
    return %c0_i32, %arg0 : i32, i32
  }
  func.func @transform_3(%arg0: i32, %arg1: i32) -> (i32, i32) {
    %c0_i32 = arith.constant 0 : i32
    return %arg1, %arg0 : i32, i32
  }
}

</mosaic_0001>

<llo_original>
// kernel: tpu_custom_call.1
$region0: #{tpu_custom_call.1}
  #allocation0 [shape = 'u32[]', space=smem, size = 0x4, offset = 0x4, fixed_abs, tag = 'smem constant byte address 0x4 - core index']
  #allocation1 [shape = 'u32[144,128]{1,0:T(1,128)}', space=vmem, size = 0x12000, scoped, tag = 'internal scratch']
  %s0 = inlined_call_operand.hbm [shape: f32[8,128], index: 0, kind: input, shape index: {}]
  %s1 = inlined_call_operand.hbm [shape: f32[128,128], index: 1, kind: input, shape index: {}]
  %s2 = inlined_call_operand.vmem [shape: f32[1,128], index: 2, kind: input, shape index: {}]
  %s3 = inlined_call_operand.hbm [shape: f32[8,128], index: 3, kind: output, shape index: {}]
  %s4 = sld [smem:[#allocation0]]
  $region30: #{tpu_custom_call.1} parent=0
    _
  %s6 = ssub.s32 1, %s4
  %s7 = scalar_select 0, %s6, %s4
  $region1: #{tpu_custom_call.1} parent=0
    #allocation2 [shape = 'u8[4096]{0}', space=vmem, size = 0x1000, scoped, tag = 'input window, operand 0, single buffered']
    #allocation3 [shape = 's32[1]{0}', space=sflag, size = 0x4, scoped, tag = 'scoped memory for tpu_custom_call.1']
    #allocation4 [shape = 's32[1]{0}', space=sflag, size = 0x4, scoped, tag = 'scoped memory for tpu_custom_call.1']
    #allocation5 [shape = 'u8[65536]{0}', space=vmem, size = 0x10000, scoped, tag = 'input window, operand 1, single buffered']
    #allocation6 [shape = 's32[1]{0}', space=sflag, size = 0x4, scoped, tag = 'scoped memory for tpu_custom_call.1']
    #allocation7 [shape = 'u8[4096]{0}', space=vmem, size = 0x1000, scoped, tag = 'output window, operand 0, single buffered']
    %8 = vsyncpa [#allocation3], 0
    %9 = vsyncpa [#allocation6], 0
    %10 = vsyncpa [#allocation4], 0
    // Predicated region
    $region2: #{tpu_custom_call.1} parent=1 // pred_check
      _
    $region3: #{tpu_custom_call.1} parent=1 // pred_check_branch
      %12 = sbr.rel (0) target = $region5
    $region4: #{tpu_custom_call.1} parent=1 // pred_region
      %s14 = ssub.s32 128, 128
      %15 = vsyncadd [#allocation3], %s14
      %s17 = sshll.u32 [#allocation2], 4
      %s18 = int_to_ptr.vmem [resolvable:$true] %s17
      %20 = dma.hbm_to_vmem [thread:$0]  %s0, 128, %s18, [#allocation3]
    $region5: #{tpu_custom_call.1} parent=1 // pred_fallthru
      _
    // Predicated region
    $region6: #{tpu_custom_call.1} parent=1 // pred_check
      _
    $region7: #{tpu_custom_call.1} parent=1 // pred_check_branch
      %22 = sbr.rel (0) target = $region9
    $region8: #{tpu_custom_call.1} parent=1 // pred_region
      %s24 = ssub.s32 2048, 2048
      %25 = vsyncadd [#allocation6], %s24
      %s26 = sshll.u32 [#allocation5], 4
      %s27 = int_to_ptr.vmem [resolvable:$true] %s26
      %32 = dma.hbm_to_vmem [thread:$0]  %s1, 2048, %s27, [#allocation6], 128, 128, 8
    $region9: #{tpu_custom_call.1} parent=1 // pred_fallthru
      _
    // Predicated region
    $region10: #{tpu_custom_call.1} parent=1 // pred_check
      _
    $region11: #{tpu_custom_call.1} parent=1 // pred_check_branch
      %34 = sbr.rel (0) target = $region13
    $region12: #{tpu_custom_call.1} parent=1 // pred_region
      _
    $region13: #{tpu_custom_call.1} parent=1 // pred_fallthru
      _
    // Predicated region
    $region14: #{tpu_custom_call.1} parent=1 // pred_check
      _
    $region15: #{tpu_custom_call.1} parent=1 // pred_check_branch
      %36 = sbr.rel (0) target = $region17
    $region16: #{tpu_custom_call.1} parent=1 // pred_region
      %37 = dma.done [#allocation3], 128
    $region17: #{tpu_custom_call.1} parent=1 // pred_fallthru
      _
    // Predicated region
    $region18: #{tpu_custom_call.1} parent=1 // pred_check
      _
    $region19: #{tpu_custom_call.1} parent=1 // pred_check_branch
      %39 = sbr.rel (0) target = $region21
    $region20: #{tpu_custom_call.1} parent=1 // pred_region
      %40 = dma.done [#allocation6], 2048
    $region21: #{tpu_custom_call.1} parent=1 // pred_fallthru
      _
    %v41 = vld [vmem:[#allocation2] sm:$0xff]
    %v42 = vld [vmem:[#allocation5] sm:$0xff]
    %v43 = vld [vmem:[#allocation5 + $0x8] sm:$0xff]
    %v44 = vld [vmem:[#allocation5 + $0x10] sm:$0xff]
    %v45 = vld [vmem:[#allocation5 + $0x18] sm:$0xff]
    %v46 = vld [vmem:[#allocation5 + $0x20] sm:$0xff]
    %v47 = vld [vmem:[#allocation5 + $0x28] sm:$0xff]
    %v48 = vld [vmem:[#allocation5 + $0x30] sm:$0xff]
    %v49 = vld [vmem:[#allocation5 + $0x38] sm:$0xff]
    %v50 = vld [vmem:[#allocation5 + $0x40] sm:$0xff]
    %v51 = vld [vmem:[#allocation5 + $0x48] sm:$0xff]
    %v52 = vld [vmem:[#allocation5 + $0x50] sm:$0xff]
    %v53 = vld [vmem:[#allocation5 + $0x58] sm:$0xff]
    %v54 = vld [vmem:[#allocation5 + $0x60] sm:$0xff]
    %v55 = vld [vmem:[#allocation5 + $0x68] sm:$0xff]
    %v56 = vld [vmem:[#allocation5 + $0x70] sm:$0xff]
    %v57 = vld [vmem:[#allocation5 + $0x78] sm:$0xff]
    %v58 = vld [vmem:[%s2] sm:$0x1]
    %v60 = vlaneseq
    %v61 = vshrl.u32 %v60, 7
    %v62 = vsub.s32 0, %v61
    %v63 = vrot.slane %v58, %v62
    %65 = vmatprep.subr.mxu0 0.0
    %66 = vmatpush1.msra.mxu0 %v42
    %67 = vmatprep.subr.mxu0 0.0
    %68 = vmatpush1.msra.mxu0 %v43
    %69 = vmatprep.subr.mxu0 0.0
    %70 = vmatpush1.msra.mxu0 %v44
    %71 = vmatprep.subr.mxu0 0.0
    %72 = vmatpush1.msra.mxu0 %v45
    %73 = vmatprep.subr.mxu0 0.0
    %74 = vmatpush1.msra.mxu0 %v46
    %75 = vmatprep.subr.mxu0 0.0
    %76 = vmatpush1.msra.mxu0 %v47
    %77 = vmatprep.subr.mxu0 0.0
    %78 = vmatpush1.msra.mxu0 %v48
    %79 = vmatprep.subr.mxu0 0.0
    %80 = vmatpush1.msra.mxu0 %v49
    %81 = vmatprep.subr.mxu0 0.0
    %82 = vmatpush1.msra.mxu0 %v50
    %83 = vmatprep.subr.mxu0 0.0
    %84 = vmatpush1.msra.mxu0 %v51
    %85 = vmatprep.subr.mxu0 0.0
    %86 = vmatpush1.msra.mxu0 %v52
    %87 = vmatprep.subr.mxu0 0.0
    %88 = vmatpush1.msra.mxu0 %v53
    %89 = vmatprep.subr.mxu0 0.0
    %90 = vmatpush1.msra.mxu0 %v54
    %91 = vmatprep.subr.mxu0 0.0
    %92 = vmatpush1.msra.mxu0 %v55
    %93 = vmatprep.subr.mxu0 0.0
    %94 = vmatpush1.msra.mxu0 %v56
    %95 = vmatprep.subr.mxu0 0.0
    %96 = vmatpush1.msra.mxu0 %v57
    %97 = vmatprep.subr.mxu0 0.0
    %98 = vmatpush1.msra.mxu0 0.0
    %99 = vmatprep.subr.mxu0 0.0
    %100 = vmatpush1.msra.mxu0 0.0
    %101 = vmatprep.subr.mxu0 0.0
    %102 = vmatpush1.msra.mxu0 0.0
    %103 = vmatprep.subr.mxu0 0.0
    %104 = vmatpush1.msra.mxu0 0.0
    %105 = vmatprep.subr.mxu0 0.0
    %106 = vmatpush1.msra.mxu0 0.0
    %107 = vmatprep.subr.mxu0 0.0
    %108 = vmatpush1.msra.mxu0 0.0
    %109 = vmatprep.subr.mxu0 0.0
    %110 = vmatpush1.msra.mxu0 0.0
    %111 = vmatprep.subr.mxu0 0.0
    %112 = vmatpush1.msra.mxu0 0.0
    %113 = vmatprep.subr.mxu0 0.0
    %114 = vmatpush1.msra.mxu0 0.0
    %115 = vmatprep.subr.mxu0 0.0
    %116 = vmatpush1.msra.mxu0 0.0
    %117 = vmatprep.subr.mxu0 0.0
    %118 = vmatpush1.msra.mxu0 0.0
    %119 = vmatprep.subr.mxu0 0.0
    %120 = vmatpush1.msra.mxu0 0.0
    %121 = vmatprep.subr.mxu0 0.0
    %122 = vmatpush1.msra.mxu0 0.0
    %123 = vmatprep.subr.mxu0 0.0
    %124 = vmatpush1.msra.mxu0 0.0
    %125 = vmatprep.subr.mxu0 0.0
    %126 = vmatpush1.msra.mxu0 0.0
    %127 = vmatprep.subr.mxu0 0.0
    %128 = vmatpush1.msra.mxu0 0.0
    %129 = vmatprep.mubr.f32.mxu0 0.0
    %130 = vmatmul.mubr.f32.gmra.mrb[0].mxu0 %v41
    %v131 = vpop.f32.mrb[0].mxu0
    %v132 = vadd.f32 %v63, %v131
    %v133 = vpop.f32.mrb[0].mxu0
    %134 = vdwg.mxu0
    %v135 = vmax.f32 %v132, 0.0
    %v136 = vadd.f32 %v135, %v41
    %137 = vst [vmem:[#allocation7] sm:$0xff] %v136
    // Predicated region
    $region22: #{tpu_custom_call.1} parent=1 // pred_check
      _
    $region23: #{tpu_custom_call.1} parent=1 // pred_check_branch
      %139 = sbr.rel (0) target = $region25
    $region24: #{tpu_custom_call.1} parent=1 // pred_region
      %s141 = ssub.s32 128, 128
      %142 = vsyncadd [#allocation4], %s141
      %s144 = sshll.u32 [#allocation7], 4
      %s145 = int_to_ptr.vmem [resolvable:$true] %s144
      %147 = dma.vmem_to_hbm [thread:$0]  %s145, 128, %s3, [#allocation4]
    $region25: #{tpu_custom_call.1} parent=1 // pred_fallthru
      _
    // Predicated region
    $region26: #{tpu_custom_call.1} parent=1 // pred_check
      _
    $region27: #{tpu_custom_call.1} parent=1 // pred_check_branch
      %149 = sbr.rel (0) target = $region29
    $region28: #{tpu_custom_call.1} parent=1 // pred_region
      %150 = dma.done [#allocation4], 128
    $region29: #{tpu_custom_call.1} parent=1 // pred_fallthru
      _
    %151 = vsyncpa [#allocation3], 1
    %152 = vsyncpa [#allocation6], 1
    %153 = vsyncpa [#allocation4], 1

</llo_original>
